<compile_context>
chip_gen: v7x
topology: tpu7x:2x2x1
jax: 0.10.0
libtpu: 0.0.40
codegen_flags: <defaults>
</compile_context>

<pallas_src>
import functools

import jax
import jax.numpy as jnp
from jax import lax
from jax.experimental import pallas as pl
from jax.experimental.pallas import tpu as pltpu

_MB = 1024 * 1024


def _score_matmul_kernel(x_ref, w_ref, o_ref):
    # x_ref: (TM, H) bf16; w_ref: (H, TO) bf16; o_ref: (TM, TO) output dtype.
    # Native bf16 operands on the MXU, fp32 accumulation, one cast on the store.
    o_ref[...] = lax.dot_general(
        x_ref[...],
        w_ref[...],
        dimension_numbers=(((1,), (0,)), ((), ())),   # contract H with H (K, N) layout
        preferred_element_type=jnp.float32,
    ).astype(o_ref.dtype)


def _device_profile():
    """(vmem budget bytes, MXU tile rounding) per TPU generation."""
    try:
        kind = jax.devices()[0].device_kind.lower()
    except Exception:  # pragma: no cover - defensive
        kind = ""
    if "v6" in kind or "v7" in kind:
        return 26 * _MB, 256      # scoped VMEM default is 32 MiB on v6e/v7x
    return 12 * _MB, 128          # scoped VMEM default is 16 MiB on v5e; conservative otherwise


def _round_up(x, n):
    return ((x + n - 1) // n) * n


def _round_dn(x, n):
    return max(n, (x // n) * n)


def _pick_tiles(m, hidden, o_pad, x_bytes, out_bytes, w_bytes):
    budget, mxu = _device_profile()

    # O tile: keep the whole head resident when it fits, else stream 128k-wide blocks.
    w_cap = budget // 3
    to = o_pad
    while to > 128 and 2 * hidden * to * w_bytes > w_cap:   # double-buffered weight tile
        to = _round_dn(to // 2, 128)

    # M tile: fill the remaining budget with the streamed x / out tiles.
    remaining = budget - 2 * hidden * to * w_bytes
    per_row = 2 * hidden * x_bytes + 2 * to * out_bytes      # double-buffered x + out
    tm = max(8, min(int(remaining // per_row), 2048))

    if m <= 8:
        tm = m                                               # single (full) block
    else:
        tm = min(tm, m)
        tm = _round_dn(tm, mxu) if tm >= mxu else _round_dn(tm, 8)
        # Guarantee >= 2 M-blocks so the grid can shard across both TCs (v7x megacore).
        if m >= 16 and tm >= m:
            tm = _round_up(pl.cdiv(m, 2), 8)
    return tm, to


def _prepare_weight(weight, compute_dtype=jnp.bfloat16):
    """One-time prep: cast to bf16, transpose to (H, O), pad O to a multiple of 128."""
    out_features, _ = weight.shape
    o_pad = _round_up(out_features, 128)
    w = weight.astype(compute_dtype).T                       # (H, O): canonical (K, N) MXU operand
    if o_pad != out_features:
        w = jnp.pad(w, ((0, 0), (0, o_pad - out_features)))
    return w


@functools.partial(jax.jit, static_argnames=("out_features", "output_dtype"))
def _auto_casting_score_apply(hiddens, w_prep, out_features, output_dtype):
    *lead, hidden = hiddens.shape
    h_w, o_pad = w_prep.shape
    assert hidden == h_w, "hidden dim mismatch with score weight"

    compute_dtype = w_prep.dtype
    x2d = hiddens.reshape((-1, hidden)).astype(compute_dtype)   # no-op for bf16 hiddens
    m = x2d.shape[0]

    tm, to = _pick_tiles(
        m, hidden, o_pad,
        x_bytes=jnp.dtype(compute_dtype).itemsize,
        out_bytes=jnp.dtype(output_dtype).itemsize,
        w_bytes=jnp.dtype(compute_dtype).itemsize,
    )
    grid = (pl.cdiv(m, tm), pl.cdiv(o_pad, to))

    out2d = pl.pallas_call(
        _score_matmul_kernel,
        out_shape=jax.ShapeDtypeStruct((m, o_pad), output_dtype),
        grid_spec=pltpu.PrefetchScalarGridSpec(
            num_scalar_prefetch=0,
            grid=grid,
            in_specs=[
                # x streamed over M (constant across the inner O axis -> fetched once per M tile)
                pl.BlockSpec((tm, hidden), lambda i, j: (i, 0)),
                # weight: constant block index when grid[1] == 1 -> DMA'd into VMEM only once
                pl.BlockSpec((hidden, to), lambda i, j: (0, j)),
            ],
            out_specs=pl.BlockSpec((tm, to), lambda i, j: (i, j)),
        ),
        compiler_params=pltpu.CompilerParams(
            dimension_semantics=("parallel", "parallel"),   # shard M (and O) across TCs on v7x
        ),
    )(x2d, w_prep)

    return out2d[:, :out_features].reshape((*lead, out_features))


def make_auto_casting_score(weight, output_dtype=jnp.bfloat16):
    """Pallas port of AutoCastingScore: weight prep happens once (at "module init")."""
    out_features = weight.shape[0]
    w_prep = _prepare_weight(weight)

    def forward(hiddens):
        return _auto_casting_score_apply(hiddens, w_prep, out_features, output_dtype)

    return forward


if __name__ == "__main__":
    # Deterministic synthetic params / inputs (no checkpoint loading).
    batch, seq, hidden = 2, 8, 32
    num_labels = 4  # out_features of the `score` Linear head

    key = jax.random.PRNGKey(0)
    k_x, k_w = jax.random.split(key)

    # AutoCastingScore stores the score weight as fp32.
    weight = jax.random.normal(k_w, (num_labels, hidden), dtype=jnp.float32) * 0.02
    # hiddens typically arrive in bf16 from the backbone.
    hiddens = jax.random.normal(k_x, (batch, seq, hidden), dtype=jnp.float32).astype(jnp.bfloat16)

    score = make_auto_casting_score(weight, output_dtype=jnp.bfloat16)
    out = jax.block_until_ready(score(hiddens))

    # Reference in plain JAX: fp32 matmul of casted hiddens, bf16 cast on output.
    ref = jnp.dot(hiddens.astype(jnp.float32), weight.T).astype(jnp.bfloat16)
    assert out.shape == (batch, seq, num_labels)
    assert out.dtype == jnp.bfloat16
    assert jnp.allclose(out.astype(jnp.float32), ref.astype(jnp.float32), atol=1e-2, rtol=1e-2)

    print("KERNEL_OK")
</pallas_src>

<mosaic_0001>
module attributes {stable_mosaic.version = 11 : i64} {
  func.func @_score_matmul_kernel(%arg0: i32, %arg1: i32, %arg2: memref<8x32xbf16, #tpu.memory_space<vmem>>, %arg3: memref<32x128xbf16, #tpu.memory_space<vmem>>, %arg4: memref<8x128xbf16, #tpu.memory_space<vmem>>) attributes {dimension_semantics = [#tpu.dimension_semantics<parallel>, #tpu.dimension_semantics<parallel>], iteration_bounds = array<i64: 2, 1>, scalar_prefetch = 0 : i64, scratch_operands = 0 : i64, tpu.core_type = #tpu.core_type<tc>, window_params = [{transform_indices = @transform_0, window_bounds = array<i64: 8, 32>}, {transform_indices = @transform_1, window_bounds = array<i64: 32, 128>}, {transform_indices = @transform_2, window_bounds = array<i64: 8, 128>}]} {
    %c0 = arith.constant 0 : index
    %c0_0 = arith.constant 0 : index
    %0 = vector.load %arg2[%c0, %c0_0] : memref<8x32xbf16, #tpu.memory_space<vmem>>, vector<8x32xbf16>
    %c0_1 = arith.constant 0 : index
    %c0_2 = arith.constant 0 : index
    %1 = vector.load %arg3[%c0_1, %c0_2] : memref<32x128xbf16, #tpu.memory_space<vmem>>, vector<32x128xbf16>
    %cst = arith.constant dense<0.000000e+00> : vector<8x128xf32>
    %2 = tpu.matmul %0, %1, %cst {dimension_numbers = #tpu.dot_dimension_numbers<[1], [0], [0], [1], [0, 0, 1, 1], [], []>} : vector<8x32xbf16>, vector<32x128xbf16>, vector<8x128xf32> -> vector<8x128xf32>
    %3 = arith.truncf %2 : vector<8x128xf32> to vector<8x128xbf16>
    %c0_3 = arith.constant 0 : index
    %c0_4 = arith.constant 0 : index
    %4 = vector.load %arg4[%c0_3, %c0_4] : memref<8x128xbf16, #tpu.memory_space<vmem>>, vector<8x128xbf16>
    tpu.vector_store %arg4[%c0_3, %c0_4], %3 {strides = array<i32>} : memref<8x128xbf16, #tpu.memory_space<vmem>>, vector<8x128xbf16>,
    return
  }
  func.func @transform_0(%arg0: i32, %arg1: i32) -> (i32, i32) {
    %c0_i32 = arith.constant 0 : i32
    %c0_i32_0 = arith.constant 0 : i32
    return %arg0, %c0_i32 : i32, i32
  }
  func.func @transform_1(%arg0: i32, %arg1: i32) -> (i32, i32) {
    %c0_i32 = arith.constant 0 : i32
    %c0_i32_0 = arith.constant 0 : i32
    return %c0_i32, %arg1 : i32, i32
  }
  func.func @transform_2(%arg0: i32, %arg1: i32) -> (i32, i32) {
    %c0_i32 = arith.constant 0 : i32
    return %arg0, %arg1 : i32, i32
  }
}

</mosaic_0001>

<llo_original>
// kernel: _auto_casting_score_apply.1
$region0: #{_auto_casting_score_apply.1}
  #allocation0 [shape = 'u32[]', space=smem, size = 0x4, offset = 0x4, fixed_abs, tag = 'smem constant byte address 0x4 - core index']
  #allocation1 [shape = 'u32[144,128]{1,0:T(1,128)}', space=vmem, size = 0x12000, scoped, tag = 'internal scratch']
  %s0 = inlined_call_operand.hbm [shape: bf16[16,32], index: 0, kind: input, shape index: {}]
  %s1 = inlined_call_operand.hbm [shape: bf16[32,128], index: 1, kind: input, shape index: {}]
  %s2 = inlined_call_operand.vmem [shape: bf16[16,128], index: 2, kind: output, shape index: {}]
  %s3 = sld [smem:[#allocation0]]
  $region49: #{_auto_casting_score_apply.1} parent=0
    _
  %s5 = ssub.s32 1, %s3
  %s6 = scalar_select 0, %s5, %s3
  $region1: #{_auto_casting_score_apply.1} parent=0
    #allocation2 [shape = 'u8[4096]{0}', space=vmem, size = 0x1000, scoped, tag = 'input window, operand 0']
    #allocation3 [shape = 's32[2]{0}', space=sflag, size = 0x8, scoped, tag = 'scoped memory for _auto_casting_score_apply.1']
    #allocation4 [shape = 'u8[8192]{0}', space=vmem, size = 0x2000, scoped, tag = 'input window, operand 1, single buffered']
    #allocation5 [shape = 's32[1]{0}', space=sflag, size = 0x4, scoped, tag = 'scoped memory for _auto_casting_score_apply.1']
    %7 = vsyncpa [#allocation3], 0
    %s8 = scalar_lea.sflag [#allocation3], 1
    %9 = vsyncpa %s8, 0
    %10 = vsyncpa [#allocation5], 0
    loop: start=0, step=1, limit=4
    $region2: #{_auto_casting_score_apply.1} parent=1 // loop_pre_header
      _
    $region3: #{_auto_casting_score_apply.1} parent=1 // loop_header
      %s12 = sphi 0, %s16
      %p13 = scmp.ge.s32.totalorder %s12, 4
      %s19 = sphi 0, %s31
      %s20 = sphi 0, %s27
      %s21 = sphi 0, %s19
      %s22 = sphi 0, %s20
      %s23 = sphi 0, %s21
      %s24 = sphi 0, %s22
      %s34 = sphi 0, %s36
      %s37 = sphi 0, %s34
      %s38 = sphi 0, %s37
      %s54 = sphi 0, %s38
      %s60 = sphi 0, %s62
      %s63 = sphi 0, %s60
      %s64 = sphi 0, %s63
      %s80 = sphi 0, %s64
      %s88 = sphi 0, %s90
      %s91 = sphi 0, %s88
      %s92 = sphi 0, %s91
      %s108 = sphi 0, %s92
    $region4: #{_auto_casting_score_apply.1} parent=1 // loop_header_branch
      %15 = sbr.rel (%p13) target = $region8
    $region5: #{_auto_casting_score_apply.1} parent=1 // loop_body
      %s17 = ssub.s32 %s12, 1
      %s18 = ssub.s32 %s12, 2
      %s25 = sadd.s32 1, %s20
      %p26 = scmp.ge.s32.totalorder %s25, 1
      %s27 = scalar_select %p26, 0, %s25
      %s28 = sadd.s32 1, %s19
      %s29 = scalar_select %p26, %s28, %s19
      %p30 = scmp.ge.s32.totalorder %s29, 2
      %s31 = scalar_select %p30, 0, %s29
      %s32 = ssub.s32 %s19, %s31
      %p33 = scmp.eq.s32.totalorder %s32, 0
      %s35 = sadd.s32 %s34, 1
      %s36 = scalar_select %p33, %s34, %s35
      %p39 = pneg %p33
      %p40 = scmp.eq.s32.totalorder %s12, 1
      %p41 = por %p39, %p40
      %p42 = scmp.ne.s32.totalorder %s34, %s37
      %p43 = scmp.eq.s32.totalorder %s12, 0
      %p44 = por %p42, %p43
      %p45 = scmp.ne.s32.totalorder %s34, %s37
      %p46 = scmp.eq.s32.totalorder %s17, 1
      %p47 = por %p45, %p46
      %p48 = scmp.ne.s32.totalorder %s37, %s38
      %p49 = scmp.eq.s32.totalorder %s17, 0
      %p50 = por %p48, %p49
      %p51 = scmp.ne.s32.totalorder %s37, %s38
      %p52 = scmp.eq.s32.totalorder %s18, 1
      %p53 = por %p51, %p52
      %p55 = scmp.ne.s32.totalorder %s38, %s54
      %p56 = scmp.eq.s32.totalorder %s18, 0
      %p57 = por %p55, %p56
      %s58 = ssub.s32 %s20, %s27
      %p59 = scmp.eq.s32.totalorder %s58, 0
      %s61 = sadd.s32 %s60, 1
      %s62 = scalar_select %p59, %s60, %s61
      %p65 = pneg %p59
      %p66 = scmp.eq.s32.totalorder %s12, 1
      %p67 = por %p65, %p66
      %p68 = scmp.ne.s32.totalorder %s60, %s63
      %p69 = scmp.eq.s32.totalorder %s12, 0
      %p70 = por %p68, %p69
      %p71 = scmp.ne.s32.totalorder %s60, %s63
      %p72 = scmp.eq.s32.totalorder %s17, 1
      %p73 = por %p71, %p72
      %p74 = scmp.ne.s32.totalorder %s63, %s64
      %p75 = scmp.eq.s32.totalorder %s17, 0
      %p76 = por %p74, %p75
      %p77 = scmp.ne.s32.totalorder %s63, %s64
      %p78 = scmp.eq.s32.totalorder %s18, 1
      %p79 = por %p77, %p78
      %p81 = scmp.ne.s32.totalorder %s64, %s80
      %p82 = scmp.eq.s32.totalorder %s18, 0
      %p83 = por %p81, %p82
      %s84 = ssub.s32 %s19, %s31
      %s85 = ssub.s32 %s20, %s27
      %s86 = sor.u32 %s84, %s85
      %p87 = scmp.eq.s32.totalorder %s86, 0
      %s89 = sadd.s32 %s88, 1
      %s90 = scalar_select %p87, %s88, %s89
      %p93 = pneg %p87
      %p94 = scmp.eq.s32.totalorder %s12, 1
      %p95 = por %p93, %p94
      %p96 = scmp.ne.s32.totalorder %s88, %s91
      %p97 = scmp.eq.s32.totalorder %s12, 0
      %p98 = por %p96, %p97
      %p99 = scmp.ne.s32.totalorder %s88, %s91
      %p100 = scmp.eq.s32.totalorder %s17, 1
      %p101 = por %p99, %p100
      %p102 = scmp.ne.s32.totalorder %s91, %s92
      %p103 = scmp.eq.s32.totalorder %s17, 0
      %p104 = por %p102, %p103
      %p105 = scmp.ne.s32.totalorder %s91, %s92
      %p106 = scmp.eq.s32.totalorder %s18, 1
      %p107 = por %p105, %p106
      %p109 = scmp.ne.s32.totalorder %s92, %s108
      %p110 = scmp.eq.s32.totalorder %s18, 0
      %p111 = por %p109, %p110
      %p112 = scmp.le.s32.totalorder 1, %s12
      %p113 = scmp.lt.s32.totalorder %s12, 3
      %p114 = pnand %p112, %p113
      %p115 = pneg %p114
      // Predicated region
      $region9: #{_auto_casting_score_apply.1} parent=5 // pred_check
        _
      $region10: #{_auto_casting_score_apply.1} parent=5 // pred_check_branch
        %117 = sbr.rel (%p114) target = $region12
      $region11: #{_auto_casting_score_apply.1} parent=5 // pred_region
        %s118 = ssub.s32 %s12, 1
        // Predicated region
        $region13: #{_auto_casting_score_apply.1} parent=11 // pred_check
          %p119 = pneg %p76
        $region14: #{_auto_casting_score_apply.1} parent=11 // pred_check_branch
          %121 = sbr.rel (%p119) target = $region16
        $region15: #{_auto_casting_score_apply.1} parent=11 // pred_region
          %s123 = ssub.s32 256, 256
          %124 = vsyncadd [#allocation5], %s123
          %s125 = smul.addr %s22, 64
          %s126 = scalar_lea.hbm %s1, %s125
          %s127 = sshll.u32 [#allocation4], 4
          %s128 = int_to_ptr.vmem [resolvable:$true] %s127
          %133 = dma.hbm_to_vmem [thread:$0]  %s126, 256, %s128, [#allocation5], 64, 64, 4
        $region16: #{_auto_casting_score_apply.1} parent=11 // pred_fallthru
          _
      $region12: #{_auto_casting_score_apply.1} parent=5 // pred_fallthru
        _
      %p134 = scmp.lt.s32.totalorder %s12, 2
      // Predicated region
      $region17: #{_auto_casting_score_apply.1} parent=5 // pred_check
        %p135 = pneg %p134
      $region18: #{_auto_casting_score_apply.1} parent=5 // pred_check_branch
        %137 = sbr.rel (%p135) target = $region20
      $region19: #{_auto_casting_score_apply.1} parent=5 // pred_region
        // Predicated region
        $region21: #{_auto_casting_score_apply.1} parent=19 // pred_check
          %p138 = pneg %p44
        $region22: #{_auto_casting_score_apply.1} parent=19 // pred_check_branch
          %140 = sbr.rel (%p138) target = $region24
        $region23: #{_auto_casting_score_apply.1} parent=19 // pred_region
          %s141 = sand.u32 %s34, 1
          %s142 = scalar_lea.sflag [#allocation3], %s141
          %s143 = sand.u32 %s34, 1
          %s144 = smul.addr %s143, 4
          %s145 = scalar_lea.vmem [#allocation2], %s144
          %s147 = ssub.s32 64, 64
          %148 = vsyncadd %s142, %s147
          %s149 = smul.addr %s19, 64
          %s150 = scalar_lea.hbm %s0, %s149
          %s152 = sshll.u32 %s145, 4
          %s153 = int_to_ptr.vmem [resolvable:$true] %s152
          %155 = dma.hbm_to_vmem [thread:$0]  %s150, 64, %s153, %s142
        $region24: #{_auto_casting_score_apply.1} parent=19 // pred_fallthru
          _
      $region20: #{_auto_casting_score_apply.1} parent=5 // pred_fallthru
        _
      %p156 = scmp.le.s32.totalorder 1, %s12
      %p157 = scmp.lt.s32.totalorder %s12, 3
      %p158 = pnand %p156, %p157
      %p159 = pneg %p158
      // Predicated region
      $region25: #{_auto_casting_score_apply.1} parent=5 // pred_check
        _
      $region26: #{_auto_casting_score_apply.1} parent=5 // pred_check_branch
        %161 = sbr.rel (%p158) target = $region28
      $region27: #{_auto_casting_score_apply.1} parent=5 // pred_region
        %s162 = ssub.s32 %s12, 1
        %s163 = sand.u32 %s37, 1
        %s164 = scalar_lea.sflag [#allocation3], %s163
        %s165 = sand.u32 %s37, 1
        %s166 = smul.addr %s165, 4
        %s167 = scalar_lea.vmem [#allocation2], %s166
        // Predicated region
        $region29: #{_auto_casting_score_apply.1} parent=27 // pred_check
          %p168 = pneg %p50
        $region30: #{_auto_casting_score_apply.1} parent=27 // pred_check_branch
          %170 = sbr.rel (%p168) target = $region32
        $region31: #{_auto_casting_score_apply.1} parent=27 // pred_region
          %171 = dma.done %s164, 64
        $region32: #{_auto_casting_score_apply.1} parent=27 // pred_fallthru
          _
        // Predicated region
        $region33: #{_auto_casting_score_apply.1} parent=27 // pred_check
          %p172 = pneg %p76
        $region34: #{_auto_casting_score_apply.1} parent=27 // pred_check_branch
          %174 = sbr.rel (%p172) target = $region36
        $region35: #{_auto_casting_score_apply.1} parent=27 // pred_region
          %175 = dma.done [#allocation5], 256
        $region36: #{_auto_casting_score_apply.1} parent=27 // pred_fallthru
          _
        %s176 = sand.u32 %s37, 1
        %s177 = scalar_lea.sflag [#allocation3], %s176
        %s178 = sand.u32 %s37, 1
        %s179 = smul.addr %s178, 4
        %s180 = scalar_lea.vmem [#allocation2], %s179
        %p181 = pneg %p50
        %p182 = pneg %p47
        %p183 = pneg %p76
        %p184 = pneg %p73
        %p185 = pneg %p104
        %p186 = pneg %p101
        %p187 = scmp.lt.s32.totalorder %s21, 1
        %s188 = scalar_select %p187, %s21, 1
        %p189 = scmp.lt.s32.totalorder %s22, 0
        %s190 = scalar_select %p189, %s22, 0
        %s191 = sadd.s32 %s190, %s188
        %s192 = smul.addr %s191, 4
        %s193 = scalar_lea.vmem %s2, %s192
        %p194 = scmp.lt.s32.totalorder %s21, 1
        %s195 = scalar_select %p194, %s21, 1
        %p196 = scmp.lt.s32.totalorder %s22, 0
        %s197 = scalar_select %p196, %s22, 0
        %s198 = sadd.s32 %s197, %s195
        %s199 = smul.addr %s198, 4
        %s200 = scalar_lea.vmem %s2, %s199
        %v202 = vld [vmem:[%s167] sm:$0xf]
        %v203 = vld [vmem:[#allocation4] sm:$0xf]
        %v204 = vld [vmem:[#allocation4 + $0x4] sm:$0xf]
        %v205 = vld [vmem:[#allocation4 + $0x8] sm:$0xf]
        %v206 = vld [vmem:[#allocation4 + $0xc] sm:$0xf]
        %v211 = vunpack.c.l.b16 %v203
        %v212 = vunpack.c.l.b16 %v204
        %v213 = vunpack.c.l.b16 %v205
        %v214 = vunpack.c.l.b16 %v206
        %v215 = vpack.c.b16 %v212, %v211
        %v216 = vpack.c.b16 %v214, %v213
        %vm219 = vcmask 261120
        %v221 = vsel %vm219, %v202, 0
        %223 = vmatprep.subr.bf16.mxu0 0
        %224 = vmatpush1.bf16.msra.mxu0 %v215
        %225 = vmatprep.subr.bf16.mxu0 0
        %226 = vmatpush1.bf16.msra.mxu0 %v216
        %227 = vmatprep.subr.bf16.mxu0 0
        %228 = vmatpush1.bf16.msra.mxu0 0
        %229 = vmatprep.subr.bf16.mxu0 0
        %230 = vmatpush1.bf16.msra.mxu0 0
        %231 = vmatprep.subr.bf16.mxu0 0
        %232 = vmatpush1.bf16.msra.mxu0 0
        %233 = vmatprep.subr.bf16.mxu0 0
        %234 = vmatpush1.bf16.msra.mxu0 0
        %235 = vmatprep.subr.bf16.mxu0 0
        %236 = vmatpush1.bf16.msra.mxu0 0
        %237 = vmatprep.subr.bf16.mxu0 0
        %238 = vmatpush1.bf16.msra.mxu0 0
        %239 = vmatprep.subr.bf16.mxu0 0
        %240 = vmatpush1.bf16.msra.mxu0 0
        %241 = vmatprep.subr.bf16.mxu0 0
        %242 = vmatpush1.bf16.msra.mxu0 0
        %243 = vmatprep.subr.bf16.mxu0 0
        %244 = vmatpush1.bf16.msra.mxu0 0
        %245 = vmatprep.subr.bf16.mxu0 0
        %246 = vmatpush1.bf16.msra.mxu0 0
        %247 = vmatprep.subr.bf16.mxu0 0
        %248 = vmatpush1.bf16.msra.mxu0 0
        %249 = vmatprep.subr.bf16.mxu0 0
        %250 = vmatpush1.bf16.msra.mxu0 0
        %251 = vmatprep.subr.bf16.mxu0 0
        %252 = vmatpush1.bf16.msra.mxu0 0
        %253 = vmatprep.subr.bf16.mxu0 0
        %254 = vmatpush1.bf16.msra.mxu0 0
        %255 = vmatprep.mubr.bf16.mxu0 0
        %256 = vmatmul.mubr.bf16.gmra.mrb[0].mxu0 %v221
        %v257 = vpop.f32.mrb[0].mxu0
        %v258 = vadd.f32 0.0, %v257
        %v259 = vpop.f32.mrb[0].mxu0
        %v260 = vpop.f32.mrb[0].mxu0
        %v261 = vpop.f32.mrb[0].mxu0
        %262 = vdwg.mxu0
        %v263 = vpack.c.bf16 %v258, %v258
        %264 = vst [vmem:[%s200] sm:$0xf] %v263
        %p265 = scmp.lt.s32.totalorder %s21, 1
        %s266 = scalar_select %p265, %s21, 1
        %p267 = scmp.lt.s32.totalorder %s22, 0
        %s268 = scalar_select %p267, %s22, 0
        %s269 = sadd.s32 %s268, %s266
        %s270 = smul.addr %s269, 4
        %s271 = scalar_lea.vmem %s2, %s270
        // Predicated region
        $region37: #{_auto_casting_score_apply.1} parent=27 // pred_check
          %p272 = pneg %p101
        $region38: #{_auto_casting_score_apply.1} parent=27 // pred_check_branch
          %274 = sbr.rel (%p272) target = $region40
        $region39: #{_auto_casting_score_apply.1} parent=27 // pred_region
          _
        $region40: #{_auto_casting_score_apply.1} parent=27 // pred_fallthru
          _
      $region28: #{_auto_casting_score_apply.1} parent=5 // pred_fallthru
        _
      %p275 = scmp.le.s32.totalorder 2, %s12
      // Predicated region
      $region41: #{_auto_casting_score_apply.1} parent=5 // pred_check
        %p276 = pneg %p275
      $region42: #{_auto_casting_score_apply.1} parent=5 // pred_check_branch
        %278 = sbr.rel (%p276) target = $region44
      $region43: #{_auto_casting_score_apply.1} parent=5 // pred_region
        %s279 = ssub.s32 %s12, 2
        // Predicated region
        $region45: #{_auto_casting_score_apply.1} parent=43 // pred_check
          %p280 = pneg %p107
        $region46: #{_auto_casting_score_apply.1} parent=43 // pred_check_branch
          %282 = sbr.rel (%p280) target = $region48
        $region47: #{_auto_casting_score_apply.1} parent=43 // pred_region
          %p283 = scmp.lt.s32.totalorder %s23, 1
          %s284 = scalar_select %p283, %s23, 1
          %p285 = scmp.lt.s32.totalorder %s24, 0
          %s286 = scalar_select %p285, %s24, 0
          %s287 = sadd.s32 %s286, %s284
          %s288 = smul.addr %s287, 4
          %s289 = scalar_lea.vmem %s2, %s288
        $region48: #{_auto_casting_score_apply.1} parent=43 // pred_fallthru
          _
      $region44: #{_auto_casting_score_apply.1} parent=5 // pred_fallthru
        _
    $region6: #{_auto_casting_score_apply.1} parent=1 // loop_footer
      %s16 = sadd.s32 1, %s12
    $region7: #{_auto_casting_score_apply.1} parent=1 // loop_footer_branch
      %11 = sbr.rel target = $region3
    $region8: #{_auto_casting_score_apply.1} parent=1 // loop_exit
      _
    %290 = vsyncpa [#allocation3], 1
    %s291 = scalar_lea.sflag [#allocation3], 1
    %292 = vsyncpa %s291, 1
    %293 = vsyncpa [#allocation5], 1

</llo_original>
